<compile_context>
chip_gen: v5e
topology: v5e:2x2
jax: 0.10.0
libtpu: 0.0.40
codegen_flags: <defaults>
</compile_context>

<pallas_src>
import functools
import math

import jax
import jax.numpy as jnp
from jax.experimental import pallas as pl
from jax.experimental.pallas import tpu as pltpu

MATMUL_DTYPE = jnp.bfloat16   # MXU-native on v5e/v6e/v7x; f32 accumulation everywhere.
_MIN_ROWS = 16                # bf16 sublane packing: batch tiles are multiples of 16 rows.


def _round_up(a, m):
    return ((a + m - 1) // m) * m


def _vmem_limit_bytes():
    """Per-generation VMEM budget instead of a fixed 32 MiB."""
    cap = 128 * 1024 * 1024
    try:
        info = pltpu.get_tpu_info()
        cap = int(getattr(info, "vmem_capacity_bytes", cap)) or cap
    except Exception:
        pass
    if cap <= 64 * 1024 * 1024:        # v7x-class part: leave headroom under 64 MiB.
        return 48 * 1024 * 1024
    return 96 * 1024 * 1024            # v5e / v6e: 128 MiB physical.


def _choose_batch_tiling(B, T, out_pad, tile_b):
    """Pick (tile_rows, padded_batch).  Keeps the z1 intermediate + output block
    within a ~8 MiB per-step working set (safe for v7x's 64 MiB VMEM) and gives
    the 'parallel' batch grid >= 2 steps when the batch is worth splitting."""
    bytes_per_row = T * 64 * (4 + 2) + 2 * T * out_pad * 2 + 256
    cap = max(_MIN_ROWS, (8 * 1024 * 1024) // bytes_per_row)
    tb = max(_MIN_ROWS, min(tile_b, cap, _round_up(B, _MIN_ROWS)))
    tb = (tb // _MIN_ROWS) * _MIN_ROWS
    n_tiles = pl.cdiv(B, tb)
    if n_tiles == 1 and B > 4 * _MIN_ROWS:
        n_tiles = 2
        tb = _round_up(pl.cdiv(B, n_tiles), _MIN_ROWS)
    return tb, tb * n_tiles


def iqn_kernel(x_ref, w1_ref, b1_ref, w2_ref, b2_ref,
               wbig_ref, bbig_ref, wout_ref, bout_ref, z_ref,
               *, n_quant, out_pad):
    """One batch tile.

      (tb,D)@(D,128) -> relu -> (tb,128)@(128,32) -> relu
      -> (tb,32)@(32,T*64) -> relu                      [phi folded into fc]
      -> per-quantile shared head: T x (tb,64)@(64,out_pad) + bias
    All dots: bf16 operands, f32 accumulation.
    """
    x = x_ref[...]
    h1 = jnp.maximum(
        jnp.dot(x, w1_ref[...], preferred_element_type=jnp.float32)
        + b1_ref[...], 0.0)
    q = jnp.maximum(
        jnp.dot(h1.astype(w2_ref.dtype), w2_ref[...],
                preferred_element_type=jnp.float32) + b2_ref[...], 0.0)
    z1 = jnp.maximum(
        jnp.dot(q.astype(wbig_ref.dtype), wbig_ref[...],
                preferred_element_type=jnp.float32) + bbig_ref[...], 0.0)
    z1b = z1.astype(wout_ref.dtype)
    wout = wout_ref[...]
    bout = bout_ref[...]
    # Shared final Linear applied per quantile group: removes the (T*64, T*out_pad)
    # block-diagonal weight (87.5%+ zero FLOPs, T^2 VMEM) of the previous version.
    for t in range(n_quant):
        zt = (jnp.dot(z1b[:, t * 64:(t + 1) * 64], wout,
                      preferred_element_type=jnp.float32) + bout)
        z_ref[:, t * out_pad:(t + 1) * out_pad] = zt.astype(z_ref.dtype)


def _quantile_embedding(toi, wphi, phib):
    """phi = relu(mean_n(cos(n*tau*pi)) * w + b) — identical to
    F.relu(Linear(1,32,bias=False)(cos_op).mean(1) + phi_bias)."""
    n = jnp.arange(64, dtype=jnp.float32)[None, :]          # (1, 64)
    cos_mat = jnp.cos(n * toi * math.pi)                     # (T, 64)
    mean_cos = jnp.mean(cos_mat, axis=1, keepdims=True)      # (T, 1)
    return jnp.maximum(mean_cos * wphi + phib, 0.0)          # (T, 32)


def prepare_iqn(params, toi):
    """Hoisted weight folding — run ONCE per (params, toi) update, not per forward.

    Folds phi into fc:  relu((q*phi_t) @ Wfc + bfc) == relu(q @ (phi_t[:,None]*Wfc) + bfc)
    and zero-pads the shared final head so T*out_pad is a multiple of 128
    (lane-dense output stores)."""
    T = toi.shape[0]
    out_size = params["wfull"].shape[1]
    step = 128 // math.gcd(T, 128)
    out_pad = max(step, _round_up(out_size, step))           # T*out_pad % 128 == 0

    phi = _quantile_embedding(toi, params["wphi"], params["phib"])        # (T, 32)
    w_big = jnp.transpose(phi[:, :, None] * params["wfc"][None, :, :],
                          (1, 0, 2)).reshape(32, T * 64)                  # (32, T*64)
    b_big = jnp.tile(params["bfc"], (1, T))                               # (1, T*64)
    wout = jnp.zeros((64, out_pad), jnp.float32).at[:, :out_size].set(params["wfull"])
    bout = jnp.zeros((1, out_pad), jnp.float32).at[:, :out_size].set(params["bfull"])

    return dict(
        w1=params["w1"].astype(MATMUL_DTYPE), b1=params["b1"],
        w2=params["w2"].astype(MATMUL_DTYPE), b2=params["b2"],
        w_big=w_big.astype(MATMUL_DTYPE), b_big=b_big,
        wout=wout.astype(MATMUL_DTYPE), bout=bout,
        toi=toi)


def iqn_forward(x, prep, *, out_size, tile_b=512, kernel_out_dtype=jnp.bfloat16):
    """Returns (z_val, toi) with z_val shaped (B, output_size, toi_num), like PyTorch."""
    B, d_in = x.shape
    T = prep["w_big"].shape[1] // 64
    out_pad = prep["wout"].shape[1]
    n_cols = T * out_pad

    tb, b_pad = _choose_batch_tiling(B, T, out_pad, tile_b)
    x_p = x.astype(MATMUL_DTYPE)
    if b_pad != B:
        x_p = jnp.pad(x_p, ((0, b_pad - B), (0, 0)))
    grid = (b_pad // tb,)

    def full_block(a):  # resident operand (constant index map -> fetched once)
        return pl.BlockSpec(a.shape, lambda i: (0,) * a.ndim)

    flops = 2 * b_pad * (d_in * 128 + 128 * 32 + 32 * T * 64 + T * 64 * out_pad)
    weight_bytes = sum(int(prep[k].size) * prep[k].dtype.itemsize
                       for k in ("w1", "b1", "w2", "b2", "w_big", "b_big", "wout", "bout"))
    bytes_accessed = int(x_p.size * x_p.dtype.itemsize + weight_bytes
                         + b_pad * n_cols * jnp.dtype(kernel_out_dtype).itemsize)

    kernel = functools.partial(iqn_kernel, n_quant=T, out_pad=out_pad)

    z_flat = pl.pallas_call(
        kernel,
        out_shape=jax.ShapeDtypeStruct((b_pad, n_cols), kernel_out_dtype),
        grid=grid,
        in_specs=[
            pl.BlockSpec((tb, d_in), lambda i: (i, 0)),
            full_block(prep["w1"]), full_block(prep["b1"]),
            full_block(prep["w2"]), full_block(prep["b2"]),
            full_block(prep["w_big"]), full_block(prep["b_big"]),
            full_block(prep["wout"]), full_block(prep["bout"]),
        ],
        out_specs=pl.BlockSpec((tb, n_cols), lambda i: (i, 0)),
        compiler_params=pltpu.CompilerParams(
            dimension_semantics=("parallel",),
            vmem_limit_bytes=_vmem_limit_bytes()),
        cost_estimate=pl.CostEstimate(
            flops=flops, transcendentals=0, bytes_accessed=bytes_accessed),
    )(x_p, prep["w1"], prep["b1"], prep["w2"], prep["b2"],
      prep["w_big"], prep["b_big"], prep["wout"], prep["bout"])

    # Glue: unpad batch, split (quantile, action), drop lane padding, upcast, transpose.
    z = z_flat[:B].reshape(B, T, out_pad)[:, :, :out_size].astype(jnp.float32)
    return jnp.transpose(z, (0, 2, 1)), prep["toi"]             # (B, out, T)


def init_params(key, input_size, output_size):
    """Deterministic init mirroring the PyTorch module's parameter shapes.
    Weights are stored pre-transposed ((in, out)) so the kernel does x @ W."""
    ks = jax.random.split(key, 10)

    def lin(kw, kb, fan_in, fan_out):
        bound = 1.0 / math.sqrt(fan_in)
        w = jax.random.uniform(kw, (fan_in, fan_out), jnp.float32, -bound, bound)
        b = jax.random.uniform(kb, (1, fan_out), jnp.float32, -bound, bound)
        return w, b

    w1, b1 = lin(ks[0], ks[1], input_size, 128)          # nn.Linear(input_size, 128)
    w2, b2 = lin(ks[2], ks[3], 128, 32)                  # nn.Linear(128, 32)
    wphi = jax.random.uniform(ks[4], (1, 32), jnp.float32, -1.0, 1.0)   # nn.Linear(1, 32, bias=False)
    phib = jax.random.uniform(ks[5], (1, 32), jnp.float32, 0.0, 1.0)    # torch.rand(32)
    wfc, bfc = lin(ks[6], ks[7], 32, 64)                 # nn.Linear(32, 64)
    wfull, bfull = lin(ks[8], ks[9], 64, output_size)    # nn.Linear(64, output_size)
    return dict(w1=w1, b1=b1, w2=w2, b2=b2, wphi=wphi, phib=phib,
                wfc=wfc, bfc=bfc, wfull=wfull, bfull=bfull)


def iqn_reference(x, toi, params):
    """Pure-JAX f32 reference mirroring the PyTorch forward exactly."""
    h1 = jnp.maximum(x @ params["w1"] + params["b1"], 0.0)
    q = jnp.maximum(h1 @ params["w2"] + params["b2"], 0.0)                  # (B, 32)
    n = jnp.arange(64, dtype=jnp.float32)[None, :]                          # (1, 64)
    cos_mat = jnp.cos(n * toi * math.pi)                                    # (T, 64)
    phi_full = cos_mat[:, :, None] * params["wphi"][0][None, None, :]       # (T, 64, 32)
    phi = jnp.maximum(phi_full.mean(axis=1) + params["phib"], 0.0)          # (T, 32)
    h = q[:, None, :] * phi[None, :, :]                                     # (B, T, 32)
    z1 = jnp.maximum(h @ params["wfc"] + params["bfc"], 0.0)                # (B, T, 64)
    z2 = z1 @ params["wfull"] + params["bfull"]                             # (B, T, out)
    return jnp.transpose(z2, (0, 2, 1))


if __name__ == "__main__":
    B = 2
    input_size = 16
    output_size = 4
    toi_num = 8

    key = jax.random.PRNGKey(0)
    k_x, k_toi, k_p = jax.random.split(key, 3)

    x = jax.random.normal(k_x, (B, input_size), dtype=jnp.float32)
    # Torch samples toi with np.random.uniform() inside forward; here it is a
    # deterministic explicit input.
    toi = jax.random.uniform(k_toi, (toi_num, 1), dtype=jnp.float32)
    params = init_params(k_p, input_size, output_size)

    prep = prepare_iqn(params, toi)                    # hoisted: once per param/toi update
    fwd = jax.jit(functools.partial(iqn_forward, out_size=output_size))

    z_val, toi_out = fwd(x, prep)
    z_val = jax.block_until_ready(z_val)

    assert z_val.shape == (B, output_size, toi_num), z_val.shape
    assert toi_out.shape == (toi_num, 1), toi_out.shape

    z_ref = jax.block_until_ready(iqn_reference(x, toi, params))
    max_err = float(jnp.max(jnp.abs(z_val - z_ref)))
    # Loose tolerance: bf16 matmul operands / bf16 output store (f32 accumulation).
    assert jnp.allclose(z_val, z_ref, atol=5e-2, rtol=5e-2), max_err

    print("KERNEL_OK")
</pallas_src>

<mosaic_0001>
module attributes {stable_mosaic.version = 11 : i64} {
  func.func @iqn_kernel(%arg0: i32, %arg1: memref<16x16xbf16, #tpu.memory_space<vmem>>, %arg2: memref<16x128xbf16, #tpu.memory_space<vmem>>, %arg3: memref<1x128xf32, #tpu.memory_space<vmem>>, %arg4: memref<128x32xbf16, #tpu.memory_space<vmem>>, %arg5: memref<1x32xf32, #tpu.memory_space<vmem>>, %arg6: memref<32x512xbf16, #tpu.memory_space<vmem>>, %arg7: memref<1x512xf32, #tpu.memory_space<vmem>>, %arg8: memref<64x16xbf16, #tpu.memory_space<vmem>>, %arg9: memref<1x16xf32, #tpu.memory_space<vmem>>, %arg10: memref<16x128xbf16, #tpu.memory_space<vmem>>) attributes {dimension_semantics = [#tpu.dimension_semantics<parallel>], iteration_bounds = array<i64: 1>, scalar_prefetch = 0 : i64, scratch_operands = 0 : i64, tpu.core_type = #tpu.core_type<tc>, window_params = [{transform_indices = @transform_0, window_bounds = array<i64: 16, 16>}, {pipeline_mode = #tpu.pipeline_mode<synchronous>, transform_indices = @transform_1, window_bounds = array<i64: 16, 128>}, {pipeline_mode = #tpu.pipeline_mode<synchronous>, transform_indices = @transform_2, window_bounds = array<i64: 1, 128>}, {pipeline_mode = #tpu.pipeline_mode<synchronous>, transform_indices = @transform_3, window_bounds = array<i64: 128, 32>}, {pipeline_mode = #tpu.pipeline_mode<synchronous>, transform_indices = @transform_4, window_bounds = array<i64: 1, 32>}, {pipeline_mode = #tpu.pipeline_mode<synchronous>, transform_indices = @transform_5, window_bounds = array<i64: 32, 512>}, {pipeline_mode = #tpu.pipeline_mode<synchronous>, transform_indices = @transform_6, window_bounds = array<i64: 1, 512>}, {pipeline_mode = #tpu.pipeline_mode<synchronous>, transform_indices = @transform_7, window_bounds = array<i64: 64, 16>}, {pipeline_mode = #tpu.pipeline_mode<synchronous>, transform_indices = @transform_8, window_bounds = array<i64: 1, 16>}, {transform_indices = @transform_9, window_bounds = array<i64: 16, 128>}]} {
    %c0 = arith.constant 0 : index
    %c0_0 = arith.constant 0 : index
    %0 = vector.load %arg1[%c0, %c0_0] : memref<16x16xbf16, #tpu.memory_space<vmem>>, vector<16x16xbf16>
    %c0_1 = arith.constant 0 : index
    %c0_2 = arith.constant 0 : index
    %1 = vector.load %arg2[%c0_1, %c0_2] : memref<16x128xbf16, #tpu.memory_space<vmem>>, vector<16x128xbf16>
    %cst = arith.constant dense<0.000000e+00> : vector<16x128xf32>
    %2 = tpu.matmul %0, %1, %cst {dimension_numbers = #tpu.dot_dimension_numbers<[1], [0], [0], [1], [0, 0, 1, 1], [], []>} : vector<16x16xbf16>, vector<16x128xbf16>, vector<16x128xf32> -> vector<16x128xf32>
    %c0_3 = arith.constant 0 : index
    %c0_4 = arith.constant 0 : index
    %3 = vector.load %arg3[%c0_3, %c0_4] : memref<1x128xf32, #tpu.memory_space<vmem>>, vector<1x128xf32>
    %4 = vector.broadcast %3 : vector<1x128xf32> to vector<16x128xf32>
    %5 = arith.addf %2, %4 : vector<16x128xf32>
    %cst_5 = arith.constant 0.000000e+00 : f32
    %6 = vector.broadcast %cst_5 : f32 to vector<16x128xf32>
    %7 = arith.maximumf %5, %6 : vector<16x128xf32>
    %8 = arith.truncf %7 : vector<16x128xf32> to vector<16x128xbf16>
    %c0_6 = arith.constant 0 : index
    %c0_7 = arith.constant 0 : index
    %9 = vector.load %arg4[%c0_6, %c0_7] : memref<128x32xbf16, #tpu.memory_space<vmem>>, vector<128x32xbf16>
    %cst_8 = arith.constant dense<0.000000e+00> : vector<16x32xf32>
    %10 = tpu.matmul %8, %9, %cst_8 {dimension_numbers = #tpu.dot_dimension_numbers<[1], [0], [0], [1], [0, 0, 1, 1], [], []>} : vector<16x128xbf16>, vector<128x32xbf16>, vector<16x32xf32> -> vector<16x32xf32>
    %c0_9 = arith.constant 0 : index
    %c0_10 = arith.constant 0 : index
    %11 = vector.load %arg5[%c0_9, %c0_10] : memref<1x32xf32, #tpu.memory_space<vmem>>, vector<1x32xf32>
    %12 = vector.broadcast %11 : vector<1x32xf32> to vector<16x32xf32>
    %13 = arith.addf %10, %12 : vector<16x32xf32>
    %cst_11 = arith.constant 0.000000e+00 : f32
    %14 = vector.broadcast %cst_11 : f32 to vector<16x32xf32>
    %15 = arith.maximumf %13, %14 : vector<16x32xf32>
    %16 = arith.truncf %15 : vector<16x32xf32> to vector<16x32xbf16>
    %c0_12 = arith.constant 0 : index
    %c0_13 = arith.constant 0 : index
    %17 = vector.load %arg6[%c0_12, %c0_13] : memref<32x512xbf16, #tpu.memory_space<vmem>>, vector<32x512xbf16>
    %cst_14 = arith.constant dense<0.000000e+00> : vector<16x512xf32>
    %18 = tpu.matmul %16, %17, %cst_14 {dimension_numbers = #tpu.dot_dimension_numbers<[1], [0], [0], [1], [0, 0, 1, 1], [], []>} : vector<16x32xbf16>, vector<32x512xbf16>, vector<16x512xf32> -> vector<16x512xf32>
    %c0_15 = arith.constant 0 : index
    %c0_16 = arith.constant 0 : index
    %19 = vector.load %arg7[%c0_15, %c0_16] : memref<1x512xf32, #tpu.memory_space<vmem>>, vector<1x512xf32>
    %20 = vector.broadcast %19 : vector<1x512xf32> to vector<16x512xf32>
    %21 = arith.addf %18, %20 : vector<16x512xf32>
    %cst_17 = arith.constant 0.000000e+00 : f32
    %22 = vector.broadcast %cst_17 : f32 to vector<16x512xf32>
    %23 = arith.maximumf %21, %22 : vector<16x512xf32>
    %24 = arith.truncf %23 : vector<16x512xf32> to vector<16x512xbf16>
    %c0_18 = arith.constant 0 : index
    %c0_19 = arith.constant 0 : index
    %25 = vector.load %arg8[%c0_18, %c0_19] : memref<64x16xbf16, #tpu.memory_space<vmem>>, vector<64x16xbf16>
    %c0_20 = arith.constant 0 : index
    %c0_21 = arith.constant 0 : index
    %26 = vector.load %arg9[%c0_20, %c0_21] : memref<1x16xf32, #tpu.memory_space<vmem>>, vector<1x16xf32>
    %27 = vector.extract_strided_slice %24 {offsets = [0, 0], sizes = [16, 64], strides = [1, 1]} : vector<16x512xbf16> to vector<16x64xbf16>
    %cst_22 = arith.constant dense<0.000000e+00> : vector<16x16xf32>
    %28 = tpu.matmul %27, %25, %cst_22 {dimension_numbers = #tpu.dot_dimension_numbers<[1], [0], [0], [1], [0, 0, 1, 1], [], []>} : vector<16x64xbf16>, vector<64x16xbf16>, vector<16x16xf32> -> vector<16x16xf32>
    %29 = vector.broadcast %26 : vector<1x16xf32> to vector<16x16xf32>
    %30 = arith.addf %28, %29 : vector<16x16xf32>
    %31 = arith.truncf %30 : vector<16x16xf32> to vector<16x16xbf16>
    %c0_23 = arith.constant 0 : index
    %c0_24 = arith.constant 0 : index
    %32 = vector.load %arg10[%c0_23, %c0_24] : memref<16x128xbf16, #tpu.memory_space<vmem>>, vector<16x16xbf16>
    tpu.vector_store %arg10[%c0_23, %c0_24], %31 {strides = array<i32>} : memref<16x128xbf16, #tpu.memory_space<vmem>>, vector<16x16xbf16>,
    %33 = vector.extract_strided_slice %24 {offsets = [0, 64], sizes = [16, 64], strides = [1, 1]} : vector<16x512xbf16> to vector<16x64xbf16>
    %cst_25 = arith.constant dense<0.000000e+00> : vector<16x16xf32>
    %34 = tpu.matmul %33, %25, %cst_25 {dimension_numbers = #tpu.dot_dimension_numbers<[1], [0], [0], [1], [0, 0, 1, 1], [], []>} : vector<16x64xbf16>, vector<64x16xbf16>, vector<16x16xf32> -> vector<16x16xf32>
    %35 = vector.broadcast %26 : vector<1x16xf32> to vector<16x16xf32>
    %36 = arith.addf %34, %35 : vector<16x16xf32>
    %37 = arith.truncf %36 : vector<16x16xf32> to vector<16x16xbf16>
    %c0_26 = arith.constant 0 : index
    %c16 = arith.constant 16 : index
    %38 = vector.load %arg10[%c0_26, %c16] : memref<16x128xbf16, #tpu.memory_space<vmem>>, vector<16x16xbf16>
    tpu.vector_store %arg10[%c0_26, %c16], %37 {strides = array<i32>} : memref<16x128xbf16, #tpu.memory_space<vmem>>, vector<16x16xbf16>,
    %39 = vector.extract_strided_slice %24 {offsets = [0, 128], sizes = [16, 64], strides = [1, 1]} : vector<16x512xbf16> to vector<16x64xbf16>
    %cst_27 = arith.constant dense<0.000000e+00> : vector<16x16xf32>
    %40 = tpu.matmul %39, %25, %cst_27 {dimension_numbers = #tpu.dot_dimension_numbers<[1], [0], [0], [1], [0, 0, 1, 1], [], []>} : vector<16x64xbf16>, vector<64x16xbf16>, vector<16x16xf32> -> vector<16x16xf32>
    %41 = vector.broadcast %26 : vector<1x16xf32> to vector<16x16xf32>
    %42 = arith.addf %40, %41 : vector<16x16xf32>
    %43 = arith.truncf %42 : vector<16x16xf32> to vector<16x16xbf16>
    %c0_28 = arith.constant 0 : index
    %c32 = arith.constant 32 : index
    %44 = vector.load %arg10[%c0_28, %c32] : memref<16x128xbf16, #tpu.memory_space<vmem>>, vector<16x16xbf16>
    tpu.vector_store %arg10[%c0_28, %c32], %43 {strides = array<i32>} : memref<16x128xbf16, #tpu.memory_space<vmem>>, vector<16x16xbf16>,
    %45 = vector.extract_strided_slice %24 {offsets = [0, 192], sizes = [16, 64], strides = [1, 1]} : vector<16x512xbf16> to vector<16x64xbf16>
    %cst_29 = arith.constant dense<0.000000e+00> : vector<16x16xf32>
    %46 = tpu.matmul %45, %25, %cst_29 {dimension_numbers = #tpu.dot_dimension_numbers<[1], [0], [0], [1], [0, 0, 1, 1], [], []>} : vector<16x64xbf16>, vector<64x16xbf16>, vector<16x16xf32> -> vector<16x16xf32>
    %47 = vector.broadcast %26 : vector<1x16xf32> to vector<16x16xf32>
    %48 = arith.addf %46, %47 : vector<16x16xf32>
    %49 = arith.truncf %48 : vector<16x16xf32> to vector<16x16xbf16>
    %c0_30 = arith.constant 0 : index
    %c48 = arith.constant 48 : index
    %50 = vector.load %arg10[%c0_30, %c48] : memref<16x128xbf16, #tpu.memory_space<vmem>>, vector<16x16xbf16>
    tpu.vector_store %arg10[%c0_30, %c48], %49 {strides = array<i32>} : memref<16x128xbf16, #tpu.memory_space<vmem>>, vector<16x16xbf16>,
    %51 = vector.extract_strided_slice %24 {offsets = [0, 256], sizes = [16, 64], strides = [1, 1]} : vector<16x512xbf16> to vector<16x64xbf16>
    %cst_31 = arith.constant dense<0.000000e+00> : vector<16x16xf32>
    %52 = tpu.matmul %51, %25, %cst_31 {dimension_numbers = #tpu.dot_dimension_numbers<[1], [0], [0], [1], [0, 0, 1, 1], [], []>} : vector<16x64xbf16>, vector<64x16xbf16>, vector<16x16xf32> -> vector<16x16xf32>
    %53 = vector.broadcast %26 : vector<1x16xf32> to vector<16x16xf32>
    %54 = arith.addf %52, %53 : vector<16x16xf32>
    %55 = arith.truncf %54 : vector<16x16xf32> to vector<16x16xbf16>
    %c0_32 = arith.constant 0 : index
    %c64 = arith.constant 64 : index
    %56 = vector.load %arg10[%c0_32, %c64] : memref<16x128xbf16, #tpu.memory_space<vmem>>, vector<16x16xbf16>
    tpu.vector_store %arg10[%c0_32, %c64], %55 {strides = array<i32>} : memref<16x128xbf16, #tpu.memory_space<vmem>>, vector<16x16xbf16>,
    %57 = vector.extract_strided_slice %24 {offsets = [0, 320], sizes = [16, 64], strides = [1, 1]} : vector<16x512xbf16> to vector<16x64xbf16>
    %cst_33 = arith.constant dense<0.000000e+00> : vector<16x16xf32>
    %58 = tpu.matmul %57, %25, %cst_33 {dimension_numbers = #tpu.dot_dimension_numbers<[1], [0], [0], [1], [0, 0, 1, 1], [], []>} : vector<16x64xbf16>, vector<64x16xbf16>, vector<16x16xf32> -> vector<16x16xf32>
    %59 = vector.broadcast %26 : vector<1x16xf32> to vector<16x16xf32>
    %60 = arith.addf %58, %59 : vector<16x16xf32>
    %61 = arith.truncf %60 : vector<16x16xf32> to vector<16x16xbf16>
    %c0_34 = arith.constant 0 : index
    %c80 = arith.constant 80 : index
    %62 = vector.load %arg10[%c0_34, %c80] : memref<16x128xbf16, #tpu.memory_space<vmem>>, vector<16x16xbf16>
    tpu.vector_store %arg10[%c0_34, %c80], %61 {strides = array<i32>} : memref<16x128xbf16, #tpu.memory_space<vmem>>, vector<16x16xbf16>,
    %63 = vector.extract_strided_slice %24 {offsets = [0, 384], sizes = [16, 64], strides = [1, 1]} : vector<16x512xbf16> to vector<16x64xbf16>
    %cst_35 = arith.constant dense<0.000000e+00> : vector<16x16xf32>
    %64 = tpu.matmul %63, %25, %cst_35 {dimension_numbers = #tpu.dot_dimension_numbers<[1], [0], [0], [1], [0, 0, 1, 1], [], []>} : vector<16x64xbf16>, vector<64x16xbf16>, vector<16x16xf32> -> vector<16x16xf32>
    %65 = vector.broadcast %26 : vector<1x16xf32> to vector<16x16xf32>
    %66 = arith.addf %64, %65 : vector<16x16xf32>
    %67 = arith.truncf %66 : vector<16x16xf32> to vector<16x16xbf16>
    %c0_36 = arith.constant 0 : index
    %c96 = arith.constant 96 : index
    %68 = vector.load %arg10[%c0_36, %c96] : memref<16x128xbf16, #tpu.memory_space<vmem>>, vector<16x16xbf16>
    tpu.vector_store %arg10[%c0_36, %c96], %67 {strides = array<i32>} : memref<16x128xbf16, #tpu.memory_space<vmem>>, vector<16x16xbf16>,
    %69 = vector.extract_strided_slice %24 {offsets = [0, 448], sizes = [16, 64], strides = [1, 1]} : vector<16x512xbf16> to vector<16x64xbf16>
    %cst_37 = arith.constant dense<0.000000e+00> : vector<16x16xf32>
    %70 = tpu.matmul %69, %25, %cst_37 {dimension_numbers = #tpu.dot_dimension_numbers<[1], [0], [0], [1], [0, 0, 1, 1], [], []>} : vector<16x64xbf16>, vector<64x16xbf16>, vector<16x16xf32> -> vector<16x16xf32>
    %71 = vector.broadcast %26 : vector<1x16xf32> to vector<16x16xf32>
    %72 = arith.addf %70, %71 : vector<16x16xf32>
    %73 = arith.truncf %72 : vector<16x16xf32> to vector<16x16xbf16>
    %c0_38 = arith.constant 0 : index
    %c112 = arith.constant 112 : index
    %74 = vector.load %arg10[%c0_38, %c112] : memref<16x128xbf16, #tpu.memory_space<vmem>>, vector<16x16xbf16>
    tpu.vector_store %arg10[%c0_38, %c112], %73 {strides = array<i32>} : memref<16x128xbf16, #tpu.memory_space<vmem>>, vector<16x16xbf16>,
    return
  }
  func.func @transform_0(%arg0: i32) -> (i32, i32) {
    %c0_i32 = arith.constant 0 : i32
    %c0_i32_0 = arith.constant 0 : i32
    return %arg0, %c0_i32 : i32, i32
  }
  func.func @transform_1(%arg0: i32) -> (i32, i32) {
    %c0_i32 = arith.constant 0 : i32
    %c0_i32_0 = arith.constant 0 : i32
    %c0_i32_1 = arith.constant 0 : i32
    return %c0_i32, %c0_i32_0 : i32, i32
  }
  func.func @transform_2(%arg0: i32) -> (i32, i32) {
    %c0_i32 = arith.constant 0 : i32
    %c0_i32_0 = arith.constant 0 : i32
    %c0_i32_1 = arith.constant 0 : i32
    return %c0_i32, %c0_i32_0 : i32, i32
  }
  func.func @transform_3(%arg0: i32) -> (i32, i32) {
    %c0_i32 = arith.constant 0 : i32
    %c0_i32_0 = arith.constant 0 : i32
    %c0_i32_1 = arith.constant 0 : i32
    return %c0_i32, %c0_i32_0 : i32, i32
  }
  func.func @transform_4(%arg0: i32) -> (i32, i32) {
    %c0_i32 = arith.constant 0 : i32
    %c0_i32_0 = arith.constant 0 : i32
    %c0_i32_1 = arith.constant 0 : i32
    return %c0_i32, %c0_i32_0 : i32, i32
  }
  func.func @transform_5(%arg0: i32) -> (i32, i32) {
    %c0_i32 = arith.constant 0 : i32
    %c0_i32_0 = arith.constant 0 : i32
    %c0_i32_1 = arith.constant 0 : i32
    return %c0_i32, %c0_i32_0 : i32, i32
  }
  func.func @transform_6(%arg0: i32) -> (i32, i32) {
    %c0_i32 = arith.constant 0 : i32
    %c0_i32_0 = arith.constant 0 : i32
    %c0_i32_1 = arith.constant 0 : i32
    return %c0_i32, %c0_i32_0 : i32, i32
  }
  func.func @transform_7(%arg0: i32) -> (i32, i32) {
    %c0_i32 = arith.constant 0 : i32
    %c0_i32_0 = arith.constant 0 : i32
    %c0_i32_1 = arith.constant 0 : i32
    return %c0_i32, %c0_i32_0 : i32, i32
  }
  func.func @transform_8(%arg0: i32) -> (i32, i32) {
    %c0_i32 = arith.constant 0 : i32
    %c0_i32_0 = arith.constant 0 : i32
    %c0_i32_1 = arith.constant 0 : i32
    return %c0_i32, %c0_i32_0 : i32, i32
  }
  func.func @transform_9(%arg0: i32) -> (i32, i32) {
    %c0_i32 = arith.constant 0 : i32
    %c0_i32_0 = arith.constant 0 : i32
    return %arg0, %c0_i32 : i32, i32
  }
}

</mosaic_0001>

<llo_original>
// kernel: iqn_forward.1
$region0: #{iqn_forward.1}
  #allocation0 [shape = 'u32[]', space=smem, size = 0x4, offset = 0x4, fixed_abs, tag = 'smem constant byte address 0x4 - core index']
  #allocation1 [shape = 'u32[72,128]{1,0:T(1,128)}', space=vmem, size = 0x9000, scoped, tag = 'internal scratch']
  %s0 = inlined_call_operand.vmem [shape: bf16[16,16], index: 0, kind: input, shape index: {}]
  %s1 = inlined_call_operand.vmem [shape: bf16[16,128], index: 1, kind: input, shape index: {}]
  %s2 = inlined_call_operand.vmem [shape: f32[1,128], index: 2, kind: input, shape index: {}]
  %s3 = inlined_call_operand.vmem [shape: bf16[128,32], index: 3, kind: input, shape index: {}]
  %s4 = inlined_call_operand.vmem [shape: f32[1,32], index: 4, kind: input, shape index: {}]
  %s5 = inlined_call_operand.vmem [shape: bf16[32,512], index: 5, kind: input, shape index: {}]
  %s6 = inlined_call_operand.vmem [shape: f32[1,512], index: 6, kind: input, shape index: {}]
  %s7 = inlined_call_operand.vmem [shape: bf16[64,16], index: 7, kind: input, shape index: {}]
  %s8 = inlined_call_operand.vmem [shape: f32[1,16], index: 8, kind: input, shape index: {}]
  %s9 = inlined_call_operand.vmem [shape: bf16[16,128], index: 9, kind: output, shape index: {}]
  %s10 = sld [smem:[#allocation0]]
  $region46: #{iqn_forward.1} parent=0
    _
  %s12 = ssub.s32 1, %s10
  %s13 = scalar_select 0, %s12, %s10
  // Predicated region
  $region2: #{iqn_forward.1} parent=0 // pred_check
    _
  $region3: #{iqn_forward.1} parent=0 // pred_check_branch
    %15 = sbr.rel (0) target = $region5
  $region4: #{iqn_forward.1} parent=0 // pred_region
    _
  $region5: #{iqn_forward.1} parent=0 // pred_fallthru
    _
  // Predicated region
  $region6: #{iqn_forward.1} parent=0 // pred_check
    _
  $region7: #{iqn_forward.1} parent=0 // pred_check_branch
    %17 = sbr.rel (0) target = $region9
  $region8: #{iqn_forward.1} parent=0 // pred_region
    _
  $region9: #{iqn_forward.1} parent=0 // pred_fallthru
    _
  // Predicated region
  $region10: #{iqn_forward.1} parent=0 // pred_check
    _
  $region11: #{iqn_forward.1} parent=0 // pred_check_branch
    %19 = sbr.rel (0) target = $region13
  $region12: #{iqn_forward.1} parent=0 // pred_region
    _
  $region13: #{iqn_forward.1} parent=0 // pred_fallthru
    _
  // Predicated region
  $region14: #{iqn_forward.1} parent=0 // pred_check
    _
  $region15: #{iqn_forward.1} parent=0 // pred_check_branch
    %21 = sbr.rel (0) target = $region17
  $region16: #{iqn_forward.1} parent=0 // pred_region
    _
  $region17: #{iqn_forward.1} parent=0 // pred_fallthru
    _
  // Predicated region
  $region18: #{iqn_forward.1} parent=0 // pred_check
    _
  $region19: #{iqn_forward.1} parent=0 // pred_check_branch
    %23 = sbr.rel (0) target = $region21
  $region20: #{iqn_forward.1} parent=0 // pred_region
    _
  $region21: #{iqn_forward.1} parent=0 // pred_fallthru
    _
  // Predicated region
  $region22: #{iqn_forward.1} parent=0 // pred_check
    _
  $region23: #{iqn_forward.1} parent=0 // pred_check_branch
    %25 = sbr.rel (0) target = $region25
  $region24: #{iqn_forward.1} parent=0 // pred_region
    _
  $region25: #{iqn_forward.1} parent=0 // pred_fallthru
    _
  // Predicated region
  $region26: #{iqn_forward.1} parent=0 // pred_check
    _
  $region27: #{iqn_forward.1} parent=0 // pred_check_branch
    %27 = sbr.rel (0) target = $region29
  $region28: #{iqn_forward.1} parent=0 // pred_region
    _
  $region29: #{iqn_forward.1} parent=0 // pred_fallthru
    _
  // Predicated region
  $region30: #{iqn_forward.1} parent=0 // pred_check
    _
  $region31: #{iqn_forward.1} parent=0 // pred_check_branch
    %29 = sbr.rel (0) target = $region33
  $region32: #{iqn_forward.1} parent=0 // pred_region
    _
  $region33: #{iqn_forward.1} parent=0 // pred_fallthru
    _
  // Predicated region
  $region34: #{iqn_forward.1} parent=0 // pred_check
    _
  $region35: #{iqn_forward.1} parent=0 // pred_check_branch
    %31 = sbr.rel (0) target = $region37
  $region36: #{iqn_forward.1} parent=0 // pred_region
    _
  $region37: #{iqn_forward.1} parent=0 // pred_fallthru
    _
  %v33 = vld [vmem:[%s0] sm:$0xf]
  %v34 = vld [vmem:[%s0 + $0x4] sm:$0xf]
  %v35 = vld [vmem:[%s1] sm:$0xf]
  %v36 = vld [vmem:[%s1 + $0x4] sm:$0xf]
  %v37 = vld [vmem:[%s2] sm:$0x1]
  %v39 = vperm.slane %v37, 0
  %v43 = vunpack.c.l.b16 %v33
  %v44 = vunpack.c.l.b16 %v34
  %v45 = vpack.c.b16 %v44, %v43
  %v48 = vunpack.c.l.b16 %v35
  %v49 = vunpack.c.l.b16 %v36
  %v50 = vpack.c.b16 %v49, %v48
  %vm52 = vcmask 130048
  %v54 = vsel %vm52, %v45, 0
  %56 = vmatpush.bf16.msra.mxu0 0
  %57 = vmatpush.bf16.msra.mxu0 0
  %58 = vmatpush.bf16.msra.mxu0 0
  %59 = vmatpush.bf16.msra.mxu0 0
  %60 = vmatpush.bf16.msra.mxu0 0
  %61 = vmatpush.bf16.msra.mxu0 0
  %62 = vmatpush.bf16.msra.mxu0 0
  %63 = vmatpush.bf16.msra.mxu0 %v50
  %64 = vmatmul.bf16.gmra.mxu0 %v54
  %v65 = vpop.f32.mrf.mxu0
  %v66 = vadd.f32 %v39, %v65
  %v67 = vpop.f32.mrf.mxu0
  %v68 = vadd.f32 %v39, %v67
  %69 = vdwg.mxu0
  %v70 = vmax.f32 %v66, 0.0
  %v71 = vmax.f32 %v68, 0.0
  %v72 = vpack.c.bf16 %v71, %v70
  %v73 = vld [vmem:[%s3] sm:$0xf]
  %v74 = vld [vmem:[%s3 + $0x4] sm:$0xf]
  %v75 = vld [vmem:[%s3 + $0x8] sm:$0xf]
  %v76 = vld [vmem:[%s3 + $0xc] sm:$0xf]
  %v77 = vld [vmem:[%s3 + $0x10] sm:$0xf]
  %v78 = vld [vmem:[%s3 + $0x14] sm:$0xf]
  %v79 = vld [vmem:[%s3 + $0x18] sm:$0xf]
  %v80 = vld [vmem:[%s3 + $0x1c] sm:$0xf]
  %v81 = vld [vmem:[%s3 + $0x20] sm:$0xf]
  %v82 = vld [vmem:[%s3 + $0x24] sm:$0xf]
  %v83 = vld [vmem:[%s3 + $0x28] sm:$0xf]
  %v84 = vld [vmem:[%s3 + $0x2c] sm:$0xf]
  %v85 = vld [vmem:[%s3 + $0x30] sm:$0xf]
  %v86 = vld [vmem:[%s3 + $0x34] sm:$0xf]
  %v87 = vld [vmem:[%s3 + $0x38] sm:$0xf]
  %v88 = vld [vmem:[%s3 + $0x3c] sm:$0xf]
  %v89 = vld [vmem:[%s4] sm:$0x1]
  %v91 = vperm.slane %v89, 0
  %v109 = vunpack.c.l.b16 %v73
  %v110 = vunpack.c.l.b16 %v74
  %v111 = vunpack.c.l.b16 %v75
  %v112 = vunpack.c.l.b16 %v76
  %v113 = vunpack.c.l.b16 %v77
  %v114 = vunpack.c.l.b16 %v78
  %v115 = vunpack.c.l.b16 %v79
  %v116 = vunpack.c.l.b16 %v80
  %v117 = vunpack.c.l.b16 %v81
  %v118 = vunpack.c.l.b16 %v82
  %v119 = vunpack.c.l.b16 %v83
  %v120 = vunpack.c.l.b16 %v84
  %v121 = vunpack.c.l.b16 %v85
  %v122 = vunpack.c.l.b16 %v86
  %v123 = vunpack.c.l.b16 %v87
  %v124 = vunpack.c.l.b16 %v88
  %v125 = vpack.c.b16 %v110, %v109
  %v126 = vpack.c.b16 %v112, %v111
  %v127 = vpack.c.b16 %v114, %v113
  %v128 = vpack.c.b16 %v116, %v115
  %v129 = vpack.c.b16 %v118, %v117
  %v130 = vpack.c.b16 %v120, %v119
  %v131 = vpack.c.b16 %v122, %v121
  %v132 = vpack.c.b16 %v124, %v123
  %141 = vmatpush.bf16.msra.mxu0 %v132
  %142 = vmatpush.bf16.msra.mxu0 %v131
  %143 = vmatpush.bf16.msra.mxu0 %v130
  %144 = vmatpush.bf16.msra.mxu0 %v129
  %145 = vmatpush.bf16.msra.mxu0 %v128
  %146 = vmatpush.bf16.msra.mxu0 %v127
  %147 = vmatpush.bf16.msra.mxu0 %v126
  %148 = vmatpush.bf16.msra.mxu0 %v125
  %149 = vmatmul.bf16.gmra.mxu0 %v72
  %v150 = vpop.f32.mrf.mxu0
  %v151 = vadd.f32 %v91, %v150
  %v152 = vpop.f32.mrf.mxu0
  %v153 = vadd.f32 %v91, %v152
  %154 = vdwg.mxu0
  %v155 = vmax.f32 %v151, 0.0
  %v156 = vmax.f32 %v153, 0.0
  %v157 = vpack.c.bf16 %v156, %v155
  %v158 = vld [vmem:[%s5] sm:$0xff]
  %v159 = vld [vmem:[%s5 + $0x8] sm:$0xff]
  %v160 = vld [vmem:[%s5 + $0x10] sm:$0xff]
  %v161 = vld [vmem:[%s5 + $0x18] sm:$0xff]
  %v162 = vld [vmem:[%s5 + $0x20] sm:$0xff]
  %v163 = vld [vmem:[%s5 + $0x28] sm:$0xff]
  %v164 = vld [vmem:[%s5 + $0x30] sm:$0xff]
  %v165 = vld [vmem:[%s5 + $0x38] sm:$0xff]
  %v166 = vld [vmem:[%s6] sm:$0xf]
  %v168 = vperm.slane %v166, 0
  %v169 = vperm.slane %v166, 1
  %v170 = vperm.slane %v166, 2
  %v171 = vperm.slane %v166, 3
  %v184 = vunpack.c.l.b16 %v158
  %v185 = vunpack.c.h.b16 %v158
  %v186 = vunpack.c.l.b16 %v159
  %v187 = vunpack.c.h.b16 %v159
  %v188 = vunpack.c.l.b16 %v160
  %v189 = vunpack.c.h.b16 %v160
  %v190 = vunpack.c.l.b16 %v161
  %v191 = vunpack.c.h.b16 %v161
  %v192 = vunpack.c.l.b16 %v162
  %v193 = vunpack.c.h.b16 %v162
  %v194 = vunpack.c.l.b16 %v163
  %v195 = vunpack.c.h.b16 %v163
  %v196 = vunpack.c.l.b16 %v164
  %v197 = vunpack.c.h.b16 %v164
  %v198 = vunpack.c.l.b16 %v165
  %v199 = vunpack.c.h.b16 %v165
  %v200 = vpack.c.b16 %v188, %v184
  %v201 = vpack.c.b16 %v189, %v185
  %v202 = vpack.c.b16 %v190, %v186
  %v203 = vpack.c.b16 %v191, %v187
  %v204 = vpack.c.b16 %v196, %v192
  %v205 = vpack.c.b16 %v197, %v193
  %v206 = vpack.c.b16 %v198, %v194
  %v207 = vpack.c.b16 %v199, %v195
  %vm216 = vcmask 261120
  %v218 = vsel %vm216, %v157, 0
  %220 = vmatpush.bf16.msra.mxu0 0
  %221 = vmatpush.bf16.msra.mxu0 0
  %222 = vmatpush.bf16.msra.mxu0 0
  %223 = vmatpush.bf16.msra.mxu0 0
  %224 = vmatpush.bf16.msra.mxu0 0
  %225 = vmatpush.bf16.msra.mxu0 0
  %226 = vmatpush.bf16.msra.mxu0 %v204
  %227 = vmatpush.bf16.msra.mxu0 %v200
  %228 = vmatmul.bf16.gmra.mxu0 %v218
  %v229 = vpop.f32.mrf.mxu0
  %v230 = vadd.f32 %v168, %v229
  %v231 = vpop.f32.mrf.mxu0
  %v232 = vadd.f32 %v168, %v231
  %233 = vdwg.mxu0
  %234 = vmatpush.bf16.msra.mxu0 0
  %235 = vmatpush.bf16.msra.mxu0 0
  %236 = vmatpush.bf16.msra.mxu0 0
  %237 = vmatpush.bf16.msra.mxu0 0
  %238 = vmatpush.bf16.msra.mxu0 0
  %239 = vmatpush.bf16.msra.mxu0 0
  %240 = vmatpush.bf16.msra.mxu0 %v205
  %241 = vmatpush.bf16.msra.mxu0 %v201
  %242 = vmatmul.bf16.gmra.mxu0 %v218
  %v243 = vpop.f32.mrf.mxu0
  %v244 = vadd.f32 %v169, %v243
  %v245 = vpop.f32.mrf.mxu0
  %v246 = vadd.f32 %v169, %v245
  %247 = vdwg.mxu0
  %248 = vmatpush.bf16.msra.mxu0 0
  %249 = vmatpush.bf16.msra.mxu0 0
  %250 = vmatpush.bf16.msra.mxu0 0
  %251 = vmatpush.bf16.msra.mxu0 0
  %252 = vmatpush.bf16.msra.mxu0 0
  %253 = vmatpush.bf16.msra.mxu0 0
  %254 = vmatpush.bf16.msra.mxu0 %v206
  %255 = vmatpush.bf16.msra.mxu0 %v202
  %256 = vmatmul.bf16.gmra.mxu0 %v218
  %v257 = vpop.f32.mrf.mxu0
  %v258 = vadd.f32 %v170, %v257
  %v259 = vpop.f32.mrf.mxu0
  %v260 = vadd.f32 %v170, %v259
  %261 = vdwg.mxu0
  %262 = vmatpush.bf16.msra.mxu0 0
  %263 = vmatpush.bf16.msra.mxu0 0
  %264 = vmatpush.bf16.msra.mxu0 0
  %265 = vmatpush.bf16.msra.mxu0 0
  %266 = vmatpush.bf16.msra.mxu0 0
  %267 = vmatpush.bf16.msra.mxu0 0
  %268 = vmatpush.bf16.msra.mxu0 %v207
  %269 = vmatpush.bf16.msra.mxu0 %v203
  %270 = vmatmul.bf16.gmra.mxu0 %v218
  %v271 = vpop.f32.mrf.mxu0
  %v272 = vadd.f32 %v171, %v271
  %v273 = vpop.f32.mrf.mxu0
  %v274 = vadd.f32 %v171, %v273
  %275 = vdwg.mxu0
  %v276 = vmax.f32 %v230, 0.0
  %v277 = vmax.f32 %v244, 0.0
  %v278 = vmax.f32 %v258, 0.0
  %v279 = vmax.f32 %v272, 0.0
  %v280 = vmax.f32 %v232, 0.0
  %v281 = vmax.f32 %v246, 0.0
  %v282 = vmax.f32 %v260, 0.0
  %v283 = vmax.f32 %v274, 0.0
  %v284 = vpack.c.bf16 %v277, %v276
  %v285 = vpack.c.bf16 %v279, %v278
  %v286 = vpack.c.bf16 %v281, %v280
  %v287 = vpack.c.bf16 %v283, %v282
  %v288 = vld [vmem:[%s7] sm:$0xf]
  %v289 = vld [vmem:[%s7 + $0x4] sm:$0xf]
  %v290 = vld [vmem:[%s7 + $0x8] sm:$0xf]
  %v291 = vld [vmem:[%s7 + $0xc] sm:$0xf]
  %v292 = vld [vmem:[%s7 + $0x10] sm:$0xf]
  %v293 = vld [vmem:[%s7 + $0x14] sm:$0xf]
  %v294 = vld [vmem:[%s7 + $0x18] sm:$0xf]
  %v295 = vld [vmem:[%s7 + $0x1c] sm:$0xf]
  %v296 = vld [vmem:[%s8] sm:$0x1]
  %v298 = vperm.slane %v296, 0
  %v302 = vunpack.c.l.b16 %v284
  %v303 = vunpack.c.l.b16 %v286
  %v304 = vpack.c.b16 %v303, %v302
  %v313 = vunpack.c.l.b16 %v288
  %v314 = vunpack.c.l.b16 %v289
  %v315 = vunpack.c.l.b16 %v290
  %v316 = vunpack.c.l.b16 %v291
  %v317 = vunpack.c.l.b16 %v292
  %v318 = vunpack.c.l.b16 %v293
  %v319 = vunpack.c.l.b16 %v294
  %v320 = vunpack.c.l.b16 %v295
  %v321 = vpack.c.b16 %v314, %v313
  %v322 = vpack.c.b16 %v316, %v315
  %v323 = vpack.c.b16 %v318, %v317
  %v324 = vpack.c.b16 %v320, %v319
  %vm329 = vcmask 523264
  %v331 = vsel %vm329, %v304, 0
  %333 = vmatpush.bf16.msra.mxu0 0
  %334 = vmatpush.bf16.msra.mxu0 0
  %335 = vmatpush.bf16.msra.mxu0 0
  %336 = vmatpush.bf16.msra.mxu0 0
  %337 = vmatpush.bf16.msra.mxu0 %v324
  %338 = vmatpush.bf16.msra.mxu0 %v323
  %339 = vmatpush.bf16.msra.mxu0 %v322
  %340 = vmatpush.bf16.msra.mxu0 %v321
  %341 = vmatmul.bf16.gmra.mxu0 %v331
  %v342 = vpop.f32.mrf.mxu0
  %v343 = vadd.f32 %v298, %v342
  %v344 = vpop.f32.mrf.mxu0
  %v345 = vadd.f32 %v298, %v344
  %346 = vdwg.mxu0
  %v347 = vpack.c.bf16 %v343, %v343
  %v348 = vpack.c.bf16 %v345, %v345
  %vm349 = vcmask 125952
  %350 = vst.msk [vmem:[%s9] sm:$0xf] %vm349, %v347
  %351 = vst.msk [vmem:[%s9 + $0x4] sm:$0xf] %vm349, %v348
  %352 = vrot.lane.b32.xlu0 %v304, 64
  %v353 = vpop.permute.xlu0 %352
  %v355 = vsel %vm329, %v353, 0
  %357 = vmatpush.bf16.msra.mxu0 0
  %358 = vmatpush.bf16.msra.mxu0 0
  %359 = vmatpush.bf16.msra.mxu0 0
  %360 = vmatpush.bf16.msra.mxu0 0
  %361 = vmatpush.bf16.msra.mxu0 %v324
  %362 = vmatpush.bf16.msra.mxu0 %v323
  %363 = vmatpush.bf16.msra.mxu0 %v322
  %364 = vmatpush.bf16.msra.mxu0 %v321
  %365 = vmatmul.bf16.gmra.mxu0 %v355
  %v366 = vpop.f32.mrf.mxu0
  %v367 = vadd.f32 %v298, %v366
  %v368 = vpop.f32.mrf.mxu0
  %v369 = vadd.f32 %v298, %v368
  %370 = vdwg.mxu0
  %v371 = vpack.c.bf16 %v367, %v367
  %v372 = vpack.c.bf16 %v369, %v369
  %375 = vrot.lane.b32.xlu0 %v371, 16
  %v376 = vpop.permute.xlu0 %375
  %377 = vrot.lane.b32.xlu0 %v372, 16
  %v378 = vpop.permute.xlu0 %377
  %vm381 = vcmask 257152
  %382 = vst.msk [vmem:[%s9] sm:$0xf] %vm381, %v376
  %383 = vst.msk [vmem:[%s9 + $0x4] sm:$0xf] %vm381, %v378
  %v384 = vunpack.c.h.b16 %v284
  %v385 = vunpack.c.h.b16 %v286
  %v386 = vpack.c.b16 %v385, %v384
  %v388 = vsel %vm329, %v386, 0
  %390 = vmatpush.bf16.msra.mxu0 0
  %391 = vmatpush.bf16.msra.mxu0 0
  %392 = vmatpush.bf16.msra.mxu0 0
  %393 = vmatpush.bf16.msra.mxu0 0
  %394 = vmatpush.bf16.msra.mxu0 %v324
  %395 = vmatpush.bf16.msra.mxu0 %v323
  %396 = vmatpush.bf16.msra.mxu0 %v322
  %397 = vmatpush.bf16.msra.mxu0 %v321
  %398 = vmatmul.bf16.gmra.mxu0 %v388
  %v399 = vpop.f32.mrf.mxu0
  %v400 = vadd.f32 %v298, %v399
  %v401 = vpop.f32.mrf.mxu0
  %v402 = vadd.f32 %v298, %v401
  %403 = vdwg.mxu0
  %v404 = vpack.c.bf16 %v400, %v400
  %v405 = vpack.c.bf16 %v402, %v402
  %408 = vrot.lane.b32.xlu0 %v404, 32
  %v409 = vpop.permute.xlu0 %408
  %410 = vrot.lane.b32.xlu0 %v405, 32
  %v411 = vpop.permute.xlu0 %410
  %vm414 = vcmask 388352
  %415 = vst.msk [vmem:[%s9] sm:$0xf] %vm414, %v409
  %416 = vst.msk [vmem:[%s9 + $0x4] sm:$0xf] %vm414, %v411
  %417 = vrot.lane.b32.xlu0 %v386, 64
  %v418 = vpop.permute.xlu0 %417
  %v420 = vsel %vm329, %v418, 0
  %422 = vmatpush.bf16.msra.mxu0 0
  %423 = vmatpush.bf16.msra.mxu0 0
  %424 = vmatpush.bf16.msra.mxu0 0
  %425 = vmatpush.bf16.msra.mxu0 0
  %426 = vmatpush.bf16.msra.mxu0 %v324
  %427 = vmatpush.bf16.msra.mxu0 %v323
  %428 = vmatpush.bf16.msra.mxu0 %v322
  %429 = vmatpush.bf16.msra.mxu0 %v321
  %430 = vmatmul.bf16.gmra.mxu0 %v420
  %v431 = vpop.f32.mrf.mxu0
  %v432 = vadd.f32 %v298, %v431
  %v433 = vpop.f32.mrf.mxu0
  %v434 = vadd.f32 %v298, %v433
  %435 = vdwg.mxu0
  %v436 = vpack.c.bf16 %v432, %v432
  %v437 = vpack.c.bf16 %v434, %v434
  %440 = vrot.lane.b32.xlu0 %v436, 48
  %v441 = vpop.permute.xlu0 %440
  %442 = vrot.lane.b32.xlu0 %v437, 48
  %v443 = vpop.permute.xlu0 %442
  %vm446 = vcmask 519552
  %447 = vst.msk [vmem:[%s9] sm:$0xf] %vm446, %v441
  %448 = vst.msk [vmem:[%s9 + $0x4] sm:$0xf] %vm446, %v443
  %v451 = vunpack.c.l.b16 %v285
  %v452 = vunpack.c.l.b16 %v287
  %v453 = vpack.c.b16 %v452, %v451
  %v455 = vsel %vm329, %v453, 0
  %457 = vmatpush.bf16.msra.mxu0 0
  %458 = vmatpush.bf16.msra.mxu0 0
  %459 = vmatpush.bf16.msra.mxu0 0
  %460 = vmatpush.bf16.msra.mxu0 0
  %461 = vmatpush.bf16.msra.mxu0 %v324
  %462 = vmatpush.bf16.msra.mxu0 %v323
  %463 = vmatpush.bf16.msra.mxu0 %v322
  %464 = vmatpush.bf16.msra.mxu0 %v321
  %465 = vmatmul.bf16.gmra.mxu0 %v455
  %v466 = vpop.f32.mrf.mxu0
  %v467 = vadd.f32 %v298, %v466
  %v468 = vpop.f32.mrf.mxu0
  %v469 = vadd.f32 %v298, %v468
  %470 = vdwg.mxu0
  %v471 = vpack.c.bf16 %v467, %v467
  %v472 = vpack.c.bf16 %v469, %v469
  %475 = vrot.lane.b32.xlu0 %v471, 64
  %v476 = vpop.permute.xlu0 %475
  %477 = vrot.lane.b32.xlu0 %v472, 64
  %v478 = vpop.permute.xlu0 %477
  %vm481 = vcmask 650752
  %482 = vst.msk [vmem:[%s9] sm:$0xf] %vm481, %v476
  %483 = vst.msk [vmem:[%s9 + $0x4] sm:$0xf] %vm481, %v478
  %484 = vrot.lane.b32.xlu0 %v453, 64
  %v485 = vpop.permute.xlu0 %484
  %v487 = vsel %vm329, %v485, 0
  %489 = vmatpush.bf16.msra.mxu0 0
  %490 = vmatpush.bf16.msra.mxu0 0
  %491 = vmatpush.bf16.msra.mxu0 0
  %492 = vmatpush.bf16.msra.mxu0 0
  %493 = vmatpush.bf16.msra.mxu0 %v324
  %494 = vmatpush.bf16.msra.mxu0 %v323
  %495 = vmatpush.bf16.msra.mxu0 %v322
  %496 = vmatpush.bf16.msra.mxu0 %v321
  %497 = vmatmul.bf16.gmra.mxu0 %v487
  %v498 = vpop.f32.mrf.mxu0
  %v499 = vadd.f32 %v298, %v498
  %v500 = vpop.f32.mrf.mxu0
  %v501 = vadd.f32 %v298, %v500
  %502 = vdwg.mxu0
  %v503 = vpack.c.bf16 %v499, %v499
  %v504 = vpack.c.bf16 %v501, %v501
  %507 = vrot.lane.b32.xlu0 %v503, 80
  %v508 = vpop.permute.xlu0 %507
  %509 = vrot.lane.b32.xlu0 %v504, 80
  %v510 = vpop.permute.xlu0 %509
  %vm513 = vcmask 781952
  %514 = vst.msk [vmem:[%s9] sm:$0xf] %vm513, %v508
  %515 = vst.msk [vmem:[%s9 + $0x4] sm:$0xf] %vm513, %v510
  %v516 = vunpack.c.h.b16 %v285
  %v517 = vunpack.c.h.b16 %v287
  %v518 = vpack.c.b16 %v517, %v516
  %v520 = vsel %vm329, %v518, 0
  %522 = vmatpush.bf16.msra.mxu0 0
  %523 = vmatpush.bf16.msra.mxu0 0
  %524 = vmatpush.bf16.msra.mxu0 0
  %525 = vmatpush.bf16.msra.mxu0 0
  %526 = vmatpush.bf16.msra.mxu0 %v324
  %527 = vmatpush.bf16.msra.mxu0 %v323
  %528 = vmatpush.bf16.msra.mxu0 %v322
  %529 = vmatpush.bf16.msra.mxu0 %v321
  %530 = vmatmul.bf16.gmra.mxu0 %v520
  %v531 = vpop.f32.mrf.mxu0
  %v532 = vadd.f32 %v298, %v531
  %v533 = vpop.f32.mrf.mxu0
  %v534 = vadd.f32 %v298, %v533
  %535 = vdwg.mxu0
  %v536 = vpack.c.bf16 %v532, %v532
  %v537 = vpack.c.bf16 %v534, %v534
  %540 = vrot.lane.b32.xlu0 %v536, 96
  %v541 = vpop.permute.xlu0 %540
  %542 = vrot.lane.b32.xlu0 %v537, 96
  %v543 = vpop.permute.xlu0 %542
  %vm546 = vcmask 913152
  %547 = vst.msk [vmem:[%s9] sm:$0xf] %vm546, %v541
  %548 = vst.msk [vmem:[%s9 + $0x4] sm:$0xf] %vm546, %v543
  %549 = vrot.lane.b32.xlu0 %v518, 64
  %v550 = vpop.permute.xlu0 %549
  %v552 = vsel %vm329, %v550, 0
  %554 = vmatpush.bf16.msra.mxu0 0
  %555 = vmatpush.bf16.msra.mxu0 0
  %556 = vmatpush.bf16.msra.mxu0 0
  %557 = vmatpush.bf16.msra.mxu0 0
  %558 = vmatpush.bf16.msra.mxu0 %v324
  %559 = vmatpush.bf16.msra.mxu0 %v323
  %560 = vmatpush.bf16.msra.mxu0 %v322
  %561 = vmatpush.bf16.msra.mxu0 %v321
  %562 = vmatmul.bf16.gmra.mxu0 %v552
  %v563 = vpop.f32.mrf.mxu0
  %v564 = vadd.f32 %v298, %v563
  %v565 = vpop.f32.mrf.mxu0
  %v566 = vadd.f32 %v298, %v565
  %567 = vdwg.mxu0
  %v568 = vpack.c.bf16 %v564, %v564
  %v569 = vpack.c.bf16 %v566, %v566
  %572 = vrot.lane.b32.xlu0 %v568, 112
  %v573 = vpop.permute.xlu0 %572
  %574 = vrot.lane.b32.xlu0 %v569, 112
  %v575 = vpop.permute.xlu0 %574
  %vm578 = vcmask 1044352
  %579 = vst.msk [vmem:[%s9] sm:$0xf] %vm578, %v573
  %580 = vst.msk [vmem:[%s9 + $0x4] sm:$0xf] %vm578, %v575
  // Predicated region
  $region38: #{iqn_forward.1} parent=0 // pred_check
    _
  $region39: #{iqn_forward.1} parent=0 // pred_check_branch
    %582 = sbr.rel (0) target = $region41
  $region40: #{iqn_forward.1} parent=0 // pred_region
    _
  $region41: #{iqn_forward.1} parent=0 // pred_fallthru
    _
  // Predicated region
  $region42: #{iqn_forward.1} parent=0 // pred_check
    _
  $region43: #{iqn_forward.1} parent=0 // pred_check_branch
    %584 = sbr.rel (0) target = $region45
  $region44: #{iqn_forward.1} parent=0 // pred_region
    _
  $region45: #{iqn_forward.1} parent=0 // pred_fallthru
    _

</llo_original>
